<compile_context>
chip_gen: v7x
topology: tpu7x:2x2x1
jax: 0.10.0
libtpu: 0.0.40
codegen_flags: <defaults>
</compile_context>

<pallas_src>
import jax
import jax.numpy as jnp
from jax.experimental import pallas as pl
from jax.experimental.pallas import tpu as pltpu


def _self_attn_kernel(x_ref, wq_ref, wkv_ref, wo_ref, o_ref, k_scr, v1_scr):
    # x_ref:   (C, N)    full spatial extent for this batch element (lane axis = spatial)
    # wq_ref:  (C, C)    query weight, pre-scaled by 1/sqrt(C)
    # wkv_ref: (2C, C)   packed [Wk; Wv]
    # wo_ref:  (C, C)    fc_out weight
    # o_ref:   (C, tq)   output tile for queries [j*tq, (j+1)*tq)
    # k_scr:   (C, N)    K projection, computed once per batch element
    # v1_scr:  (C+1, N)  V projection + constant ones row (fused softmax row-sum)
    c = wq_ref.shape[0]
    n = x_ref.shape[-1]
    tq = o_ref.shape[-1]
    j = pl.program_id(1)

    # --- K/V projection: once per batch element, reused by every query tile. -----------
    @pl.when(j == 0)
    def _():
        x = x_ref[...].astype(jnp.float32)                                  # (C, N)
        kv = jnp.dot(wkv_ref[...].astype(jnp.float32), x,
                     preferred_element_type=jnp.float32)                    # (2C, N)
        k_scr[...] = kv[:c, :]
        v1_scr[pl.ds(0, c), :] = kv[c:, :]
        v1_scr[pl.ds(c, 1), :] = jnp.ones((1, n), jnp.float32)

    # --- Q projection for this query tile only (scale already folded into Wq). ---------
    q_off = pl.multiple_of(j * tq, tq)
    x_q = x_ref[:, pl.ds(q_off, tq)].astype(jnp.float32)                    # (C, tq)
    q = jnp.dot(wq_ref[...].astype(jnp.float32), x_q,
                preferred_element_type=jnp.float32)                         # (C, tq)

    k = k_scr[...]                                                          # (C, N)
    v1 = v1_scr[...]                                                        # (C+1, N)

    # scores[p, i] = sum_c k[c, p] * q[c, i]  -> keys on sublanes, queries on lanes.
    scores = jax.lax.dot_general(
        k, q, (((0,), (0,)), ((), ())),
        preferred_element_type=jnp.float32)                                 # (N, tq)

    # Numerically stable softmax numerator; max over the key (sublane) axis lands
    # directly in lane-major (1, tq) layout.
    m = jnp.max(scores, axis=0, keepdims=True)                              # (1, tq)
    e = jnp.exp(scores - m)                                                 # (N, tq)

    # Single native (C+1, N) @ (N, tq) contraction:
    #   rows [0:C) -> V @ attn^T numerator,  row C -> softmax denominator (lane-major).
    ov = jnp.dot(v1, e, preferred_element_type=jnp.float32)                 # (C+1, tq)
    out = ov[:c, :] / ov[c:c + 1, :]                                        # (C, tq), exact

    # fc_out 1x1 conv.
    y = jnp.dot(wo_ref[...].astype(jnp.float32), out,
                preferred_element_type=jnp.float32)                         # (C, tq)
    o_ref[...] = y.astype(o_ref.dtype)


def _pick_tq(c, n, *, budget_bytes=32 * 1024 * 1024):
    """Largest lane-aligned query tile dividing n whose VMEM working set fits the budget."""
    def working_set(tq):
        # scores + e (n, tq) f32, double-buffered (C, tq) output, K and V+ones scratch,
        # double-buffered (C, n) x block; weights are negligible.
        return 4 * (2 * n * tq + 2 * c * tq + (2 * c + 1) * n + 2 * c * n)

    tq = n
    while tq % 2 == 0 and (tq // 2) % 128 == 0 and working_set(tq) > budget_bytes:
        tq //= 2
    return tq


def self_attention_layer(x_nchw, wq, wk, wv, wo, *, tq=None,
                         vmem_budget_bytes=32 * 1024 * 1024):
    """x_nchw: (B, C, H, W); w*: (C, C) 1x1-conv weights (out_ch, in_ch)."""
    b, c, h, w = x_nchw.shape
    n = h * w

    # NCHW -> (B, C, N): a pure reshape (no transpose / HBM round-trip).
    x_bcn = x_nchw.reshape(b, c, n)

    if tq is None:
        tq = _pick_tq(c, n, budget_bytes=vmem_budget_bytes)
    if n % tq != 0:
        raise ValueError(f"query tile tq={tq} must divide N={n} (no tail-drop allowed)")
    if not (tq == n or tq % 128 == 0):
        raise ValueError(f"query tile tq={tq} must be lane-aligned (multiple of 128) or equal N={n}")
    nt = n // tq

    # Fold the 1/sqrt(C) attention scale into the query weight (zero in-kernel cost)
    # and fuse the K/V projections into one (2C, C) matmul.
    wq_scaled = (wq / (c ** 0.5)).astype(x_nchw.dtype)
    wkv = jnp.concatenate([wk, wv], axis=0).astype(x_nchw.dtype)

    # Batch axis parallel (feeds both v7x TensorCores); query-tile axis must be
    # "arbitrary" when nt > 1 because the K/V scratch is carried across tiles.
    dim_sem = ("parallel", "arbitrary") if nt > 1 else ("parallel", "parallel")

    out_bcn = pl.pallas_call(
        _self_attn_kernel,
        out_shape=jax.ShapeDtypeStruct((b, c, n), x_nchw.dtype),
        grid_spec=pltpu.PrefetchScalarGridSpec(
            num_scalar_prefetch=0,
            grid=(b, nt),
            in_specs=[
                pl.BlockSpec((pl.Squeezed(), c, n), lambda i, j: (i, 0, 0)),
                pl.BlockSpec((c, c), lambda i, j: (0, 0)),
                pl.BlockSpec((2 * c, c), lambda i, j: (0, 0)),
                pl.BlockSpec((c, c), lambda i, j: (0, 0)),
            ],
            out_specs=pl.BlockSpec((pl.Squeezed(), c, tq), lambda i, j: (i, 0, j)),
            scratch_shapes=[
                pltpu.VMEM((c, n), jnp.float32),       # K
                pltpu.VMEM((c + 1, n), jnp.float32),   # V + ones row
            ],
        ),
        compiler_params=pltpu.CompilerParams(
            dimension_semantics=dim_sem,
            vmem_limit_bytes=48 * 1024 * 1024,
        ),
    )(x_bcn, wq_scaled, wkv, wo)

    # (B, C, N) -> NCHW: again a pure reshape.
    return out_bcn.reshape(b, c, h, w)


def _reference(x_nchw, wq, wk, wv, wo):
    """Pure-JAX reference matching the PyTorch forward exactly."""
    b, c, h, w = x_nchw.shape
    x = x_nchw.reshape(b, c, h * w)                       # (B, C, N)
    q = jnp.einsum("oc,bcn->bon", wq, x)
    k = jnp.einsum("oc,bcn->bon", wk, x)
    v = jnp.einsum("oc,bcn->bon", wv, x)
    scores = jnp.einsum("bcn,bcm->bnm", q, k) / (c ** 0.5)
    attn = jax.nn.softmax(scores, axis=-1)                # (B, N, N)
    out = jnp.einsum("bcm,bnm->bcn", v, attn)             # bmm(V, attn^T)
    out = jnp.einsum("oc,bcn->bon", wo, out)
    return out.reshape(b, c, h, w)


if __name__ == "__main__":
    B, C, H, W = 2, 4, 16, 16

    key = jax.random.PRNGKey(0)
    kx, kq, kk, kv, ko = jax.random.split(key, 5)

    x = jax.random.normal(kx, (B, C, H, W), dtype=jnp.float32)
    # Conv2d 1x1, bias=False -> weight (C, C, 1, 1) squeezed to (C, C); uniform in
    # +/- 1/sqrt(fan_in) like PyTorch's default init.
    bound = 1.0 / (C ** 0.5)
    wq = jax.random.uniform(kq, (C, C), jnp.float32, -bound, bound)
    wk = jax.random.uniform(kk, (C, C), jnp.float32, -bound, bound)
    wv = jax.random.uniform(kv, (C, C), jnp.float32, -bound, bound)
    wo = jax.random.uniform(ko, (C, C), jnp.float32, -bound, bound)

    y = self_attention_layer(x, wq, wk, wv, wo)
    y = jax.block_until_ready(y)

    y_ref = jax.block_until_ready(_reference(x, wq, wk, wv, wo))
    assert y.shape == (B, C, H, W)
    assert jnp.allclose(y, y_ref, atol=1e-4, rtol=1e-4), "mismatch vs reference"

    print("KERNEL_OK")
</pallas_src>

<mosaic_0001>
module attributes {stable_mosaic.version = 11 : i64} {
  func.func @_self_attn_kernel(%arg0: i32, %arg1: i32, %arg2: memref<1x4x256xf32, #tpu.memory_space<vmem>>, %arg3: memref<4x4xf32, #tpu.memory_space<vmem>>, %arg4: memref<8x4xf32, #tpu.memory_space<vmem>>, %arg5: memref<4x4xf32, #tpu.memory_space<vmem>>, %arg6: memref<1x4x256xf32, #tpu.memory_space<vmem>>, %arg7: memref<4x256xf32, #tpu.memory_space<vmem>>, %arg8: memref<5x256xf32, #tpu.memory_space<vmem>>) attributes {dimension_semantics = [#tpu.dimension_semantics<parallel>, #tpu.dimension_semantics<parallel>], iteration_bounds = array<i64: 2, 1>, scalar_prefetch = 0 : i64, scratch_operands = 2 : i64, tpu.core_type = #tpu.core_type<tc>, window_params = [{transform_indices = @transform_0, window_bounds = array<i64: 1, 4, 256>}, {pipeline_mode = #tpu.pipeline_mode<synchronous>, transform_indices = @transform_1, window_bounds = array<i64: 4, 4>}, {pipeline_mode = #tpu.pipeline_mode<synchronous>, transform_indices = @transform_2, window_bounds = array<i64: 8, 4>}, {pipeline_mode = #tpu.pipeline_mode<synchronous>, transform_indices = @transform_3, window_bounds = array<i64: 4, 4>}, {transform_indices = @transform_4, window_bounds = array<i64: 1, 4, 256>}]} {
    %c0_i32 = arith.constant 0 : i32
    %0 = arith.cmpi eq, %arg1, %c0_i32 : i32
    %1 = arith.extui %0 : i1 to i32
    %c0_i32_0 = arith.constant 0 : i32
    %2 = arith.cmpi ne, %1, %c0_i32_0 : i32
    scf.if %2 {
      %c0_17 = arith.constant 0 : index
      %c0_18 = arith.constant 0 : index
      %c0_19 = arith.constant 0 : index
      %28 = vector.load %arg2[%c0_17, %c0_18, %c0_19] : memref<1x4x256xf32, #tpu.memory_space<vmem>>, vector<1x4x256xf32>
      %29 = vector.shape_cast %28 : vector<1x4x256xf32> to vector<4x256xf32>
      %c0_20 = arith.constant 0 : index
      %c0_21 = arith.constant 0 : index
      %30 = vector.load %arg4[%c0_20, %c0_21] : memref<8x4xf32, #tpu.memory_space<vmem>>, vector<8x4xf32>
      %cst_22 = arith.constant dense<0.000000e+00> : vector<8x256xf32>
      %31 = tpu.matmul %30, %29, %cst_22 {dimension_numbers = #tpu.dot_dimension_numbers<[1], [0], [0], [1], [0, 0, 1, 1], [], []>} : vector<8x4xf32>, vector<4x256xf32>, vector<8x256xf32> -> vector<8x256xf32>
      %32 = vector.extract_strided_slice %31 {offsets = [0, 0], sizes = [4, 256], strides = [1, 1]} : vector<8x256xf32> to vector<4x256xf32>
      %c0_23 = arith.constant 0 : index
      %c0_24 = arith.constant 0 : index
      %33 = vector.load %arg7[%c0_23, %c0_24] : memref<4x256xf32, #tpu.memory_space<vmem>>, vector<4x256xf32>
      tpu.vector_store %arg7[%c0_23, %c0_24], %32 {strides = array<i32>} : memref<4x256xf32, #tpu.memory_space<vmem>>, vector<4x256xf32>,
      %34 = vector.extract_strided_slice %31 {offsets = [4, 0], sizes = [4, 256], strides = [1, 1]} : vector<8x256xf32> to vector<4x256xf32>
      %c0_25 = arith.constant 0 : index
      %c0_26 = arith.constant 0 : index
      %35 = vector.load %arg8[%c0_25, %c0_26] : memref<5x256xf32, #tpu.memory_space<vmem>>, vector<4x256xf32>
      tpu.vector_store %arg8[%c0_25, %c0_26], %34 {strides = array<i32>} : memref<5x256xf32, #tpu.memory_space<vmem>>, vector<4x256xf32>,
      %cst_27 = arith.constant 1.000000e+00 : f32
      %36 = vector.broadcast %cst_27 : f32 to vector<1x256xf32>
      %c4 = arith.constant 4 : index
      %c0_28 = arith.constant 0 : index
      %37 = vector.load %arg8[%c4, %c0_28] : memref<5x256xf32, #tpu.memory_space<vmem>>, vector<1x256xf32>
      tpu.vector_store %arg8[%c4, %c0_28], %36 {strides = array<i32>} : memref<5x256xf32, #tpu.memory_space<vmem>>, vector<1x256xf32>,
    } else {
    }
    %c256_i32 = arith.constant 256 : i32
    %3 = arith.muli %arg1, %c256_i32 : i32
    %4 = tpu.assume_multiple %3, 256 : i32
    %c0 = arith.constant 0 : index
    %c0_1 = arith.constant 0 : index
    %5 = arith.index_cast %4 : i32 to index
    %6 = vector.load %arg2[%c0, %c0_1, %5] : memref<1x4x256xf32, #tpu.memory_space<vmem>>, vector<1x4x256xf32>
    %7 = vector.shape_cast %6 : vector<1x4x256xf32> to vector<4x256xf32>
    %c0_2 = arith.constant 0 : index
    %c0_3 = arith.constant 0 : index
    %8 = vector.load %arg3[%c0_2, %c0_3] : memref<4x4xf32, #tpu.memory_space<vmem>>, vector<4x4xf32>
    %cst = arith.constant dense<0.000000e+00> : vector<4x256xf32>
    %9 = tpu.matmul %8, %7, %cst {dimension_numbers = #tpu.dot_dimension_numbers<[1], [0], [0], [1], [0, 0, 1, 1], [], []>} : vector<4x4xf32>, vector<4x256xf32>, vector<4x256xf32> -> vector<4x256xf32>
    %c0_4 = arith.constant 0 : index
    %c0_5 = arith.constant 0 : index
    %10 = vector.load %arg7[%c0_4, %c0_5] : memref<4x256xf32, #tpu.memory_space<vmem>>, vector<4x256xf32>
    %c0_6 = arith.constant 0 : index
    %c0_7 = arith.constant 0 : index
    %11 = vector.load %arg8[%c0_6, %c0_7] : memref<5x256xf32, #tpu.memory_space<vmem>>, vector<5x256xf32>
    %cst_8 = arith.constant dense<0.000000e+00> : vector<256x256xf32>
    %12 = tpu.matmul %10, %9, %cst_8 {dimension_numbers = #tpu.dot_dimension_numbers<[0], [0], [1], [1], [0, 1, 1, 1], [], []>} : vector<4x256xf32>, vector<4x256xf32>, vector<256x256xf32> -> vector<256x256xf32>
    %cst_9 = arith.constant dense<0xFF800000> : vector<256xf32>
    %13 = vector.multi_reduction <maximumf>, %12, %cst_9 [0] : vector<256x256xf32> to vector<256xf32>
    %14 = vector.shape_cast %13 : vector<256xf32> to vector<1x256xf32>
    %15 = vector.broadcast %14 : vector<1x256xf32> to vector<256x256xf32>
    %16 = arith.subf %12, %15 : vector<256x256xf32>
    %17 = math.exp %16 : vector<256x256xf32>
    %cst_10 = arith.constant dense<0.000000e+00> : vector<5x256xf32>
    %18 = tpu.matmul %11, %17, %cst_10 {dimension_numbers = #tpu.dot_dimension_numbers<[1], [0], [0], [1], [0, 0, 1, 1], [], []>} : vector<5x256xf32>, vector<256x256xf32>, vector<5x256xf32> -> vector<5x256xf32>
    %19 = vector.extract_strided_slice %18 {offsets = [0, 0], sizes = [4, 256], strides = [1, 1]} : vector<5x256xf32> to vector<4x256xf32>
    %20 = vector.extract_strided_slice %18 {offsets = [4, 0], sizes = [1, 256], strides = [1, 1]} : vector<5x256xf32> to vector<1x256xf32>
    %21 = vector.broadcast %20 : vector<1x256xf32> to vector<4x256xf32>
    %22 = arith.divf %19, %21 : vector<4x256xf32>
    %c0_11 = arith.constant 0 : index
    %c0_12 = arith.constant 0 : index
    %23 = vector.load %arg5[%c0_11, %c0_12] : memref<4x4xf32, #tpu.memory_space<vmem>>, vector<4x4xf32>
    %cst_13 = arith.constant dense<0.000000e+00> : vector<4x256xf32>
    %24 = tpu.matmul %23, %22, %cst_13 {dimension_numbers = #tpu.dot_dimension_numbers<[1], [0], [0], [1], [0, 0, 1, 1], [], []>} : vector<4x4xf32>, vector<4x256xf32>, vector<4x256xf32> -> vector<4x256xf32>
    %c0_14 = arith.constant 0 : index
    %c0_15 = arith.constant 0 : index
    %c0_16 = arith.constant 0 : index
    %25 = vector.load %arg6[%c0_14, %c0_15, %c0_16] : memref<1x4x256xf32, #tpu.memory_space<vmem>>, vector<1x4x256xf32>
    %26 = vector.shape_cast %25 : vector<1x4x256xf32> to vector<4x256xf32>
    %27 = vector.shape_cast %24 : vector<4x256xf32> to vector<1x4x256xf32>
    tpu.vector_store %arg6[%c0_14, %c0_15, %c0_16], %27 {strides = array<i32>} : memref<1x4x256xf32, #tpu.memory_space<vmem>>, vector<1x4x256xf32>,
    return
  }
  func.func @transform_0(%arg0: i32, %arg1: i32) -> (i32, i32, i32) {
    %c0_i32 = arith.constant 0 : i32
    %c0_i32_0 = arith.constant 0 : i32
    %c0_i32_1 = arith.constant 0 : i32
    return %arg0, %c0_i32, %c0_i32_0 : i32, i32, i32
  }
  func.func @transform_1(%arg0: i32, %arg1: i32) -> (i32, i32) {
    %c0_i32 = arith.constant 0 : i32
    %c0_i32_0 = arith.constant 0 : i32
    %c0_i32_1 = arith.constant 0 : i32
    return %c0_i32, %c0_i32_0 : i32, i32
  }
  func.func @transform_2(%arg0: i32, %arg1: i32) -> (i32, i32) {
    %c0_i32 = arith.constant 0 : i32
    %c0_i32_0 = arith.constant 0 : i32
    %c0_i32_1 = arith.constant 0 : i32
    return %c0_i32, %c0_i32_0 : i32, i32
  }
  func.func @transform_3(%arg0: i32, %arg1: i32) -> (i32, i32) {
    %c0_i32 = arith.constant 0 : i32
    %c0_i32_0 = arith.constant 0 : i32
    %c0_i32_1 = arith.constant 0 : i32
    return %c0_i32, %c0_i32_0 : i32, i32
  }
  func.func @transform_4(%arg0: i32, %arg1: i32) -> (i32, i32, i32) {
    %c0_i32 = arith.constant 0 : i32
    %c0_i32_0 = arith.constant 0 : i32
    return %arg0, %c0_i32, %arg1 : i32, i32, i32
  }
}

</mosaic_0001>

<llo_original>
// kernel: tpu_custom_call.1
$region0: #{tpu_custom_call.1}
  #allocation0 [shape = 'u32[]', space=smem, size = 0x4, offset = 0x4, fixed_abs, tag = 'smem constant byte address 0x4 - core index']
  #allocation1 [shape = 'u32[144,128]{1,0:T(1,128)}', space=vmem, size = 0x12000, scoped, tag = 'internal scratch']
  #allocation2 [shape = 'f32[4,256]{1,0:T(4,128)}', space=vmem, size = 0x1000, scoped, tag = 'scratch operand']
  #allocation3 [shape = 'f32[5,256]{1,0:T(8,128)}', space=vmem, size = 0x2000, scoped, tag = 'scratch operand']
  %s0 = inlined_call_operand.hbm [shape: f32[2,4,256], index: 0, kind: input, shape index: {}]
  %s1 = inlined_call_operand.vmem [shape: f32[4,4], index: 1, kind: input, shape index: {}]
  %s2 = inlined_call_operand.vmem [shape: f32[8,4], index: 2, kind: input, shape index: {}]
  %s3 = inlined_call_operand.vmem [shape: f32[4,4], index: 3, kind: input, shape index: {}]
  %s4 = inlined_call_operand.hbm [shape: f32[2,4,256], index: 4, kind: output, shape index: {}]
  %s5 = sld [smem:[#allocation0]]
  $region57: #{tpu_custom_call.1} parent=0
    _
  %s7 = ssub.s32 1, %s5
  %s8 = scalar_select 0, %s7, %s5
  $region1: #{tpu_custom_call.1} parent=0
    #allocation4 [shape = 'u8[8192]{0}', space=vmem, size = 0x2000, scoped, tag = 'input window, operand 0']
    #allocation5 [shape = 's32[2]{0}', space=sflag, size = 0x8, scoped, tag = 'scoped memory for tpu_custom_call.1']
    #allocation6 [shape = 's32[2]{0}', space=sflag, size = 0x8, scoped, tag = 'scoped memory for tpu_custom_call.1']
    #allocation7 [shape = 'u8[8192]{0}', space=vmem, size = 0x2000, scoped, tag = 'output window, operand 0']
    %9 = vsyncpa [#allocation5], 0
    %s10 = scalar_lea.sflag [#allocation5], 1
    %11 = vsyncpa %s10, 0
    %12 = vsyncpa [#allocation6], 0
    %s13 = scalar_lea.sflag [#allocation6], 1
    %14 = vsyncpa %s13, 0
    loop: start=0, step=1, limit=4
    $region2: #{tpu_custom_call.1} parent=1 // loop_pre_header
      _
    $region3: #{tpu_custom_call.1} parent=1 // loop_header
      %s16 = sphi 0, %s20
      %p17 = scmp.ge.s32.totalorder %s16, 4
      %s23 = sphi 0, %s35
      %s24 = sphi 0, %s31
      %s25 = sphi 0, %s23
      %s26 = sphi 0, %s24
      %s27 = sphi 0, %s25
      %s28 = sphi 0, %s26
      %s38 = sphi 0, %s40
      %s41 = sphi 0, %s38
      %s42 = sphi 0, %s41
      %s58 = sphi 0, %s42
      %s62 = sphi 0, %s62
      %s64 = sphi 0, %s62
      %s65 = sphi 0, %s64
      %s79 = sphi 0, %s65
      %s83 = sphi 0, %s83
      %s85 = sphi 0, %s83
      %s86 = sphi 0, %s85
      %s100 = sphi 0, %s86
      %s104 = sphi 0, %s104
      %s106 = sphi 0, %s104
      %s107 = sphi 0, %s106
      %s121 = sphi 0, %s107
      %s129 = sphi 0, %s131
      %s132 = sphi 0, %s129
      %s133 = sphi 0, %s132
      %s149 = sphi 0, %s133
    $region4: #{tpu_custom_call.1} parent=1 // loop_header_branch
      %19 = sbr.rel (%p17) target = $region8
    $region5: #{tpu_custom_call.1} parent=1 // loop_body
      %s21 = ssub.s32 %s16, 1
      %s22 = ssub.s32 %s16, 2
      %s29 = sadd.s32 1, %s24
      %p30 = scmp.ge.s32.totalorder %s29, 1
      %s31 = scalar_select %p30, 0, %s29
      %s32 = sadd.s32 1, %s23
      %s33 = scalar_select %p30, %s32, %s23
      %p34 = scmp.ge.s32.totalorder %s33, 2
      %s35 = scalar_select %p34, 0, %s33
      %s36 = ssub.s32 %s23, %s35
      %p37 = scmp.eq.s32.totalorder %s36, 0
      %s39 = sadd.s32 %s38, 1
      %s40 = scalar_select %p37, %s38, %s39
      %p43 = pneg %p37
      %p44 = scmp.eq.s32.totalorder %s16, 1
      %p45 = por %p43, %p44
      %p46 = scmp.ne.s32.totalorder %s38, %s41
      %p47 = scmp.eq.s32.totalorder %s16, 0
      %p48 = por %p46, %p47
      %p49 = scmp.ne.s32.totalorder %s38, %s41
      %p50 = scmp.eq.s32.totalorder %s21, 1
      %p51 = por %p49, %p50
      %p52 = scmp.ne.s32.totalorder %s41, %s42
      %p53 = scmp.eq.s32.totalorder %s21, 0
      %p54 = por %p52, %p53
      %p55 = scmp.ne.s32.totalorder %s41, %s42
      %p56 = scmp.eq.s32.totalorder %s22, 1
      %p57 = por %p55, %p56
      %p59 = scmp.ne.s32.totalorder %s42, %s58
      %p60 = scmp.eq.s32.totalorder %s22, 0
      %p61 = por %p59, %p60
      %s63 = sadd.s32 %s62, 1
      %p66 = scmp.eq.s32.totalorder %s16, 1
      %p67 = scmp.ne.s32.totalorder %s62, %s64
      %p68 = scmp.eq.s32.totalorder %s16, 0
      %p69 = por %p67, %p68
      %p70 = scmp.ne.s32.totalorder %s62, %s64
      %p71 = scmp.eq.s32.totalorder %s21, 1
      %p72 = por %p70, %p71
      %p73 = scmp.ne.s32.totalorder %s64, %s65
      %p74 = scmp.eq.s32.totalorder %s21, 0
      %p75 = por %p73, %p74
      %p76 = scmp.ne.s32.totalorder %s64, %s65
      %p77 = scmp.eq.s32.totalorder %s22, 1
      %p78 = por %p76, %p77
      %p80 = scmp.ne.s32.totalorder %s65, %s79
      %p81 = scmp.eq.s32.totalorder %s22, 0
      %p82 = por %p80, %p81
      %s84 = sadd.s32 %s83, 1
      %p87 = scmp.eq.s32.totalorder %s16, 1
      %p88 = scmp.ne.s32.totalorder %s83, %s85
      %p89 = scmp.eq.s32.totalorder %s16, 0
      %p90 = por %p88, %p89
      %p91 = scmp.ne.s32.totalorder %s83, %s85
      %p92 = scmp.eq.s32.totalorder %s21, 1
      %p93 = por %p91, %p92
      %p94 = scmp.ne.s32.totalorder %s85, %s86
      %p95 = scmp.eq.s32.totalorder %s21, 0
      %p96 = por %p94, %p95
      %p97 = scmp.ne.s32.totalorder %s85, %s86
      %p98 = scmp.eq.s32.totalorder %s22, 1
      %p99 = por %p97, %p98
      %p101 = scmp.ne.s32.totalorder %s86, %s100
      %p102 = scmp.eq.s32.totalorder %s22, 0
      %p103 = por %p101, %p102
      %s105 = sadd.s32 %s104, 1
      %p108 = scmp.eq.s32.totalorder %s16, 1
      %p109 = scmp.ne.s32.totalorder %s104, %s106
      %p110 = scmp.eq.s32.totalorder %s16, 0
      %p111 = por %p109, %p110
      %p112 = scmp.ne.s32.totalorder %s104, %s106
      %p113 = scmp.eq.s32.totalorder %s21, 1
      %p114 = por %p112, %p113
      %p115 = scmp.ne.s32.totalorder %s106, %s107
      %p116 = scmp.eq.s32.totalorder %s21, 0
      %p117 = por %p115, %p116
      %p118 = scmp.ne.s32.totalorder %s106, %s107
      %p119 = scmp.eq.s32.totalorder %s22, 1
      %p120 = por %p118, %p119
      %p122 = scmp.ne.s32.totalorder %s107, %s121
      %p123 = scmp.eq.s32.totalorder %s22, 0
      %p124 = por %p122, %p123
      %s125 = ssub.s32 %s23, %s35
      %s126 = ssub.s32 %s24, %s31
      %s127 = sor.u32 %s125, %s126
      %p128 = scmp.eq.s32.totalorder %s127, 0
      %s130 = sadd.s32 %s129, 1
      %s131 = scalar_select %p128, %s129, %s130
      %p134 = pneg %p128
      %p135 = scmp.eq.s32.totalorder %s16, 1
      %p136 = por %p134, %p135
      %p137 = scmp.ne.s32.totalorder %s129, %s132
      %p138 = scmp.eq.s32.totalorder %s16, 0
      %p139 = por %p137, %p138
      %p140 = scmp.ne.s32.totalorder %s129, %s132
      %p141 = scmp.eq.s32.totalorder %s21, 1
      %p142 = por %p140, %p141
      %p143 = scmp.ne.s32.totalorder %s132, %s133
      %p144 = scmp.eq.s32.totalorder %s21, 0
      %p145 = por %p143, %p144
      %p146 = scmp.ne.s32.totalorder %s132, %s133
      %p147 = scmp.eq.s32.totalorder %s22, 1
      %p148 = por %p146, %p147
      %p150 = scmp.ne.s32.totalorder %s133, %s149
      %p151 = scmp.eq.s32.totalorder %s22, 0
      %p152 = por %p150, %p151
      %p153 = scmp.le.s32.totalorder 1, %s16
      %p154 = scmp.lt.s32.totalorder %s16, 3
      %p155 = pnand %p153, %p154
      %p156 = pneg %p155
      // Predicated region
      $region9: #{tpu_custom_call.1} parent=5 // pred_check
        _
      $region10: #{tpu_custom_call.1} parent=5 // pred_check_branch
        %158 = sbr.rel (%p155) target = $region12
      $region11: #{tpu_custom_call.1} parent=5 // pred_region
        %s159 = ssub.s32 %s16, 1
        // Predicated region
        $region13: #{tpu_custom_call.1} parent=11 // pred_check
          %p160 = pneg %p75
        $region14: #{tpu_custom_call.1} parent=11 // pred_check_branch
          %162 = sbr.rel (%p160) target = $region16
        $region15: #{tpu_custom_call.1} parent=11 // pred_region
          _
        $region16: #{tpu_custom_call.1} parent=11 // pred_fallthru
          _
        // Predicated region
        $region17: #{tpu_custom_call.1} parent=11 // pred_check
          %p163 = pneg %p96
        $region18: #{tpu_custom_call.1} parent=11 // pred_check_branch
          %165 = sbr.rel (%p163) target = $region20
        $region19: #{tpu_custom_call.1} parent=11 // pred_region
          _
        $region20: #{tpu_custom_call.1} parent=11 // pred_fallthru
          _
        // Predicated region
        $region21: #{tpu_custom_call.1} parent=11 // pred_check
          %p166 = pneg %p117
        $region22: #{tpu_custom_call.1} parent=11 // pred_check_branch
          %168 = sbr.rel (%p166) target = $region24
        $region23: #{tpu_custom_call.1} parent=11 // pred_region
          _
        $region24: #{tpu_custom_call.1} parent=11 // pred_fallthru
          _
      $region12: #{tpu_custom_call.1} parent=5 // pred_fallthru
        _
      %p169 = scmp.lt.s32.totalorder %s16, 2
      // Predicated region
      $region25: #{tpu_custom_call.1} parent=5 // pred_check
        %p170 = pneg %p169
      $region26: #{tpu_custom_call.1} parent=5 // pred_check_branch
        %172 = sbr.rel (%p170) target = $region28
      $region27: #{tpu_custom_call.1} parent=5 // pred_region
        // Predicated region
        $region29: #{tpu_custom_call.1} parent=27 // pred_check
          %p173 = pneg %p48
        $region30: #{tpu_custom_call.1} parent=27 // pred_check_branch
          %175 = sbr.rel (%p173) target = $region32
        $region31: #{tpu_custom_call.1} parent=27 // pred_region
          %s176 = sand.u32 %s38, 1
          %s177 = scalar_lea.sflag [#allocation5], %s176
          %s178 = sand.u32 %s38, 1
          %s179 = smul.addr %s178, 8
          %s180 = scalar_lea.vmem [#allocation4], %s179
          %s182 = ssub.s32 128, 128
          %183 = vsyncadd %s177, %s182
          %s184 = smul.addr %s23, 2
          %s185 = smul.addr %s184, 64
          %s186 = scalar_lea.hbm %s0, %s185
          %s188 = sshll.u32 %s180, 4
          %s189 = int_to_ptr.vmem [resolvable:$true] %s188
          %191 = dma.hbm_to_vmem [thread:$0]  %s186, 128, %s189, %s177
        $region32: #{tpu_custom_call.1} parent=27 // pred_fallthru
          _
      $region28: #{tpu_custom_call.1} parent=5 // pred_fallthru
        _
      %p192 = scmp.le.s32.totalorder 1, %s16
      %p193 = scmp.lt.s32.totalorder %s16, 3
      %p194 = pnand %p192, %p193
      %p195 = pneg %p194
      // Predicated region
      $region33: #{tpu_custom_call.1} parent=5 // pred_check
        _
      $region34: #{tpu_custom_call.1} parent=5 // pred_check_branch
        %197 = sbr.rel (%p194) target = $region36
      $region35: #{tpu_custom_call.1} parent=5 // pred_region
        %s198 = ssub.s32 %s16, 1
        %s199 = sand.u32 %s41, 1
        %s200 = scalar_lea.sflag [#allocation5], %s199
        %s201 = sand.u32 %s41, 1
        %s202 = smul.addr %s201, 8
        %s203 = scalar_lea.vmem [#allocation4], %s202
        // Predicated region
        $region37: #{tpu_custom_call.1} parent=35 // pred_check
          %p204 = pneg %p54
        $region38: #{tpu_custom_call.1} parent=35 // pred_check_branch
          %206 = sbr.rel (%p204) target = $region40
        $region39: #{tpu_custom_call.1} parent=35 // pred_region
          %207 = dma.done %s200, 128
        $region40: #{tpu_custom_call.1} parent=35 // pred_fallthru
          _
        %s208 = sand.u32 %s41, 1
        %s209 = scalar_lea.sflag [#allocation5], %s208
        %s210 = sand.u32 %s41, 1
        %s211 = smul.addr %s210, 8
        %s212 = scalar_lea.vmem [#allocation4], %s211
        %p213 = pneg %p54
        %p214 = pneg %p51
        %p215 = pneg %p75
        %p216 = pneg %p72
        %p217 = pneg %p96
        %p218 = pneg %p93
        %p219 = pneg %p117
        %p220 = pneg %p114
        %p221 = pneg %p145
        %p222 = pneg %p142
        %s223 = sand.u32 %s132, 1
        %s224 = scalar_lea.sflag [#allocation6], %s223
        %s225 = sand.u32 %s132, 1
        %s226 = smul.addr %s225, 8
        %s227 = scalar_lea.vmem [#allocation7], %s226
        %s228 = smul.u32 2, %s26
        %p229 = scmp.eq.s32.totalorder %s26, 0
        // Predicated region
        $region41: #{tpu_custom_call.1} parent=35 // pred_check
          %p230 = pneg %p229
        $region42: #{tpu_custom_call.1} parent=35 // pred_check_branch
          %232 = sbr.rel (%p230) target = $region44
        $region43: #{tpu_custom_call.1} parent=35 // pred_region
          %v233 = vld [vmem:[%s203] sm:$0xff]
          %v234 = vld [vmem:[%s2] sm:$0xff]
          %v236 = vcombine.high %v233, %v233
          %vm237 = vcmask 31744
          %v239 = vsel %vm237, %v234, 0
          %vm241 = vcmask 1043456
          %v242 = vsel %vm241, %v233, 0
          %v244 = vsel %vm241, %v236, 0
          %246 = vmatprep.subr.mxu0 %v244
          %247 = vmatpush1.msra.mxu0 %v242
          %248 = vmatprep.subr.mxu0 0.0
          %249 = vmatpush1.msra.mxu0 0.0
          %250 = vmatprep.subr.mxu0 0.0
          %251 = vmatpush1.msra.mxu0 0.0
          %252 = vmatprep.subr.mxu0 0.0
          %253 = vmatpush1.msra.mxu0 0.0
          %254 = vmatprep.subr.mxu0 0.0
          %255 = vmatpush1.msra.mxu0 0.0
          %256 = vmatprep.subr.mxu0 0.0
          %257 = vmatpush1.msra.mxu0 0.0
          %258 = vmatprep.subr.mxu0 0.0
          %259 = vmatpush1.msra.mxu0 0.0
          %260 = vmatprep.subr.mxu0 0.0
          %261 = vmatpush1.msra.mxu0 0.0
          %262 = vmatprep.subr.mxu0 0.0
          %263 = vmatpush1.msra.mxu0 0.0
          %264 = vmatprep.subr.mxu0 0.0
          %265 = vmatpush1.msra.mxu0 0.0
          %266 = vmatprep.subr.mxu0 0.0
          %267 = vmatpush1.msra.mxu0 0.0
          %268 = vmatprep.subr.mxu0 0.0
          %269 = vmatpush1.msra.mxu0 0.0
          %270 = vmatprep.subr.mxu0 0.0
          %271 = vmatpush1.msra.mxu0 0.0
          %272 = vmatprep.subr.mxu0 0.0
          %273 = vmatpush1.msra.mxu0 0.0
          %274 = vmatprep.subr.mxu0 0.0
          %275 = vmatpush1.msra.mxu0 0.0
          %276 = vmatprep.subr.mxu0 0.0
          %277 = vmatpush1.msra.mxu0 0.0
          %278 = vmatprep.subr.mxu0 0.0
          %279 = vmatpush1.msra.mxu0 0.0
          %280 = vmatprep.subr.mxu0 0.0
          %281 = vmatpush1.msra.mxu0 0.0
          %282 = vmatprep.subr.mxu0 0.0
          %283 = vmatpush1.msra.mxu0 0.0
          %284 = vmatprep.subr.mxu0 0.0
          %285 = vmatpush1.msra.mxu0 0.0
          %286 = vmatprep.subr.mxu0 0.0
          %287 = vmatpush1.msra.mxu0 0.0
          %288 = vmatprep.subr.mxu0 0.0
          %289 = vmatpush1.msra.mxu0 0.0
          %290 = vmatprep.subr.mxu0 0.0
          %291 = vmatpush1.msra.mxu0 0.0
          %292 = vmatprep.subr.mxu0 0.0
          %293 = vmatpush1.msra.mxu0 0.0
          %294 = vmatprep.subr.mxu0 0.0
          %295 = vmatpush1.msra.mxu0 0.0
          %296 = vmatprep.subr.mxu0 0.0
          %297 = vmatpush1.msra.mxu0 0.0
          %298 = vmatprep.subr.mxu0 0.0
          %299 = vmatpush1.msra.mxu0 0.0
          %300 = vmatprep.subr.mxu0 0.0
          %301 = vmatpush1.msra.mxu0 0.0
          %302 = vmatprep.subr.mxu0 0.0
          %303 = vmatpush1.msra.mxu0 0.0
          %304 = vmatprep.subr.mxu0 0.0
          %305 = vmatpush1.msra.mxu0 0.0
          %306 = vmatprep.subr.mxu0 0.0
          %307 = vmatpush1.msra.mxu0 0.0
          %308 = vmatprep.subr.mxu0 0.0
          %309 = vmatpush1.msra.mxu0 0.0
          %310 = vmatprep.mubr.f32.mxu0 0.0
          %311 = vmatmul.mubr.f32.gmra.mrb[0].mxu0 %v239
          %v312 = vpop.f32.mrb[0].mxu0
          %v313 = vadd.f32 0.0, %v312
          %v314 = vpop.f32.mrb[0].mxu0
          %v315 = vadd.f32 0.0, %v314
          %316 = vdwg.mxu0
          %v319 = vcombine.low %v313, %v315
          %321 = vst [vmem:[#allocation2] sm:$0xff] %v319
          %v322 = vrot.slane %v313, 4
          %v323 = vrot.slane %v315, 4
          %326 = vst [vmem:[#allocation3] sm:$0xf] %v322
          %327 = vst [vmem:[#allocation3 + $0x8] sm:$0xf] %v323
          %v328 = vlaneseq
          %vm329 = vcmp.ge.s32.totalorder %v328, 0
          %vm330 = vcmp.lt.s32.totalorder %v328, 256
          %vm331 = vmand %vm329, %vm330
          %s332 = scalar_lea.vmem [#allocation3], 4
          %333 = vst.msk [vmem:[%s332] ss:$8 sm:$0x3] %vm331, 1.0
          %334 = vst.msk [vmem:[%s332] ss:$8 sm:$0x0] %vm331, 1.0
        $region44: #{tpu_custom_call.1} parent=35 // pred_fallthru
          _
        %s335 = smul.u32 %s26, 256
        %s336 = sshra.s32 %s335, 7
        %s337 = sand.u32 %s335, 127
        %s338 = smul.addr %s336, 4
        %s339 = scalar_lea.vmem %s203, %s338 [#allocation4]
        %v340 = vld [vmem:[%s339] sm:$0xff]
        %v341 = vld [vmem:[%s1] sm:$0xf]
        %v343 = vcombine.high %v340, %v340
        %vm344 = vcmask 31744
        %v346 = vsel %vm344, %v341, 0
        %vm348 = vcmask 1043456
        %v349 = vsel %vm348, %v340, 0
        %v351 = vsel %vm348, %v343, 0
        %353 = vmatprep.subr.mxu0 %v351
        %354 = vmatpush1.msra.mxu0 %v349
        %355 = vmatprep.subr.mxu0 0.0
        %356 = vmatpush1.msra.mxu0 0.0
        %357 = vmatprep.subr.mxu0 0.0
        %358 = vmatpush1.msra.mxu0 0.0
        %359 = vmatprep.subr.mxu0 0.0
        %360 = vmatpush1.msra.mxu0 0.0
        %361 = vmatprep.subr.mxu0 0.0
        %362 = vmatpush1.msra.mxu0 0.0
        %363 = vmatprep.subr.mxu0 0.0
        %364 = vmatpush1.msra.mxu0 0.0
        %365 = vmatprep.subr.mxu0 0.0
        %366 = vmatpush1.msra.mxu0 0.0
        %367 = vmatprep.subr.mxu0 0.0
        %368 = vmatpush1.msra.mxu0 0.0
        %369 = vmatprep.subr.mxu0 0.0
        %370 = vmatpush1.msra.mxu0 0.0
        %371 = vmatprep.subr.mxu0 0.0
        %372 = vmatpush1.msra.mxu0 0.0
        %373 = vmatprep.subr.mxu0 0.0
        %374 = vmatpush1.msra.mxu0 0.0
        %375 = vmatprep.subr.mxu0 0.0
        %376 = vmatpush1.msra.mxu0 0.0
        %377 = vmatprep.subr.mxu0 0.0
        %378 = vmatpush1.msra.mxu0 0.0
        %379 = vmatprep.subr.mxu0 0.0
        %380 = vmatpush1.msra.mxu0 0.0
        %381 = vmatprep.subr.mxu0 0.0
        %382 = vmatpush1.msra.mxu0 0.0
        %383 = vmatprep.subr.mxu0 0.0
        %384 = vmatpush1.msra.mxu0 0.0
        %385 = vmatprep.subr.mxu0 0.0
        %386 = vmatpush1.msra.mxu0 0.0
        %387 = vmatprep.subr.mxu0 0.0
        %388 = vmatpush1.msra.mxu0 0.0
        %389 = vmatprep.subr.mxu0 0.0
        %390 = vmatpush1.msra.mxu0 0.0
        %391 = vmatprep.subr.mxu0 0.0
        %392 = vmatpush1.msra.mxu0 0.0
        %393 = vmatprep.subr.mxu0 0.0
        %394 = vmatpush1.msra.mxu0 0.0
        %395 = vmatprep.subr.mxu0 0.0
        %396 = vmatpush1.msra.mxu0 0.0
        %397 = vmatprep.subr.mxu0 0.0
        %398 = vmatpush1.msra.mxu0 0.0
        %399 = vmatprep.subr.mxu0 0.0
        %400 = vmatpush1.msra.mxu0 0.0
        %401 = vmatprep.subr.mxu0 0.0
        %402 = vmatpush1.msra.mxu0 0.0
        %403 = vmatprep.subr.mxu0 0.0
        %404 = vmatpush1.msra.mxu0 0.0
        %405 = vmatprep.subr.mxu0 0.0
        %406 = vmatpush1.msra.mxu0 0.0
        %407 = vmatprep.subr.mxu0 0.0
        %408 = vmatpush1.msra.mxu0 0.0
        %409 = vmatprep.subr.mxu0 0.0
        %410 = vmatpush1.msra.mxu0 0.0
        %411 = vmatprep.subr.mxu0 0.0
        %412 = vmatpush1.msra.mxu0 0.0
        %413 = vmatprep.subr.mxu0 0.0
        %414 = vmatpush1.msra.mxu0 0.0
        %415 = vmatprep.subr.mxu0 0.0
        %416 = vmatpush1.msra.mxu0 0.0
        %417 = vmatprep.mubr.f32.mxu0 0.0
        %418 = vmatmul.mubr.f32.gmra.mrb[0].mxu0 %v346
        %v419 = vpop.f32.mrb[0].mxu0
        %v420 = vadd.f32 0.0, %v419
        %v421 = vpop.f32.mrb[0].mxu0
        %v422 = vadd.f32 0.0, %v421
        %423 = vdwg.mxu0
        %v424 = vld [vmem:[#allocation2] sm:$0xff]
        %v425 = vld [vmem:[#allocation3] sm:$0x1f]
        %v426 = vld [vmem:[#allocation3 + $0x8] sm:$0x1f]
        %v428 = vcombine.high %v424, %v424
        %430 = vxpose.xlu0.b32.start [1/16] %v424, 128
        %431 = vxpose.xlu0.b32.cont [2/16] 0.0, 128
        %432 = vxpose.xlu0.b32.cont [3/16] 0.0, 128
        %433 = vxpose.xlu0.b32.cont [4/16] 0.0, 128
        %434 = vxpose.xlu0.b32.cont [5/16] 0.0, 128
        %435 = vxpose.xlu0.b32.cont [6/16] 0.0, 128
        %436 = vxpose.xlu0.b32.cont [7/16] 0.0, 128
        %437 = vxpose.xlu0.b32.cont [8/16] 0.0, 128
        %438 = vxpose.xlu0.b32.cont [9/16] 0.0, 128
        %439 = vxpose.xlu0.b32.cont [10/16] 0.0, 128
        %440 = vxpose.xlu0.b32.cont [11/16] 0.0, 128
        %441 = vxpose.xlu0.b32.cont [12/16] 0.0, 128
        %442 = vxpose.xlu0.b32.cont [13/16] 0.0, 128
        %443 = vxpose.xlu0.b32.cont [14/16] 0.0, 128
        %444 = vxpose.xlu0.b32.cont [15/16] 0.0, 128
        %445 = vxpose.xlu0.b32.end [16/16] 0.0, 128
        %v446 = vpop.trf.xlu0
        %v447 = vpop.trf.xlu0
        %v448 = vpop.trf.xlu0
        %v449 = vpop.trf.xlu0
        %v450 = vpop.trf.xlu0
        %v451 = vpop.trf.xlu0
        %v452 = vpop.trf.xlu0
        %v453 = vpop.trf.xlu0
        %v454 = vpop.trf.xlu0
        %v455 = vpop.trf.xlu0
        %v456 = vpop.trf.xlu0
        %v457 = vpop.trf.xlu0
        %v458 = vpop.trf.xlu0
        %v459 = vpop.trf.xlu0
        %v460 = vpop.trf.xlu0
        %v461 = vpop.trf.xlu0
        %462 = vxpose.xlu0.b32.start [1/16] %v428, 128
        %463 = vxpose.xlu0.b32.cont [2/16] 0.0, 128
        %464 = vxpose.xlu0.b32.cont [3/16] 0.0, 128
        %465 = vxpose.xlu0.b32.cont [4/16] 0.0, 128
        %466 = vxpose.xlu0.b32.cont [5/16] 0.0, 128
        %467 = vxpose.xlu0.b32.cont [6/16] 0.0, 128
        %468 = vxpose.xlu0.b32.cont [7/16] 0.0, 128
        %469 = vxpose.xlu0.b32.cont [8/16] 0.0, 128
        %470 = vxpose.xlu0.b32.cont [9/16] 0.0, 128
        %471 = vxpose.xlu0.b32.cont [10/16] 0.0, 128
        %472 = vxpose.xlu0.b32.cont [11/16] 0.0, 128
        %473 = vxpose.xlu0.b32.cont [12/16] 0.0, 128
        %474 = vxpose.xlu0.b32.cont [13/16] 0.0, 128
        %475 = vxpose.xlu0.b32.cont [14/16] 0.0, 128
        %476 = vxpose.xlu0.b32.cont [15/16] 0.0, 128
        %477 = vxpose.xlu0.b32.end [16/16] 0.0, 128
        %v478 = vpop.trf.xlu0
        %v479 = vpop.trf.xlu0
        %v480 = vpop.trf.xlu0
        %v481 = vpop.trf.xlu0
        %v482 = vpop.trf.xlu0
        %v483 = vpop.trf.xlu0
        %v484 = vpop.trf.xlu0
        %v485 = vpop.trf.xlu0
        %v486 = vpop.trf.xlu0
        %v487 = vpop.trf.xlu0
        %v488 = vpop.trf.xlu0
        %v489 = vpop.trf.xlu0
        %v490 = vpop.trf.xlu0
        %v491 = vpop.trf.xlu0
        %v492 = vpop.trf.xlu0
        %v493 = vpop.trf.xlu0
        %v495 = vsel %vm344, %v446, 0
        %v498 = vsel %vm344, %v447, 0
        %v501 = vsel %vm344, %v448, 0
        %v504 = vsel %vm344, %v449, 0
        %v507 = vsel %vm344, %v450, 0
        %v510 = vsel %vm344, %v451, 0
        %v513 = vsel %vm344, %v452, 0
        %v516 = vsel %vm344, %v453, 0
        %v519 = vsel %vm344, %v454, 0
        %v522 = vsel %vm344, %v455, 0
        %v525 = vsel %vm344, %v456, 0
        %v528 = vsel %vm344, %v457, 0
        %v531 = vsel %vm344, %v458, 0
        %v534 = vsel %vm344, %v459, 0
        %v537 = vsel %vm344, %v460, 0
        %v540 = vsel %vm344, %v461, 0
        %v543 = vsel %vm344, %v478, 0
        %v546 = vsel %vm344, %v479, 0
        %v549 = vsel %vm344, %v480, 0
        %v552 = vsel %vm344, %v481, 0
        %v555 = vsel %vm344, %v482, 0
        %v558 = vsel %vm344, %v483, 0
        %v561 = vsel %vm344, %v484, 0
        %v564 = vsel %vm344, %v485, 0
        %v567 = vsel %vm344, %v486, 0
        %v570 = vsel %vm344, %v487, 0
        %v573 = vsel %vm344, %v488, 0
        %v576 = vsel %vm344, %v489, 0
        %v579 = vsel %vm344, %v490, 0
        %v582 = vsel %vm344, %v491, 0
        %v585 = vsel %vm344, %v492, 0
        %v588 = vsel %vm344, %v493, 0
        %v591 = vsel %vm348, %v420, 0
        %v594 = vsel %vm348, %v422, 0
        %596 = vmatprep.subr.mxu0 %v594
        %597 = vmatpush1.msra.mxu0 %v591
        %598 = vmatprep.subr.mxu0 0.0
        %599 = vmatpush1.msra.mxu0 0.0
        %600 = vmatprep.subr.mxu0 0.0
        %601 = vmatpush1.msra.mxu0 0.0
        %602 = vmatprep.subr.mxu0 0.0
        %603 = vmatpush1.msra.mxu0 0.0
        %604 = vmatprep.subr.mxu0 0.0
        %605 = vmatpush1.msra.mxu0 0.0
        %606 = vmatprep.subr.mxu0 0.0
        %607 = vmatpush1.msra.mxu0 0.0
        %608 = vmatprep.subr.mxu0 0.0
        %609 = vmatpush1.msra.mxu0 0.0
        %610 = vmatprep.subr.mxu0 0.0
        %611 = vmatpush1.msra.mxu0 0.0
        %612 = vmatprep.subr.mxu0 0.0
        %613 = vmatpush1.msra.mxu0 0.0
        %614 = vmatprep.subr.mxu0 0.0
        %615 = vmatpush1.msra.mxu0 0.0
        %616 = vmatprep.subr.mxu0 0.0
        %617 = vmatpush1.msra.mxu0 0.0
        %618 = vmatprep.subr.mxu0 0.0
        %619 = vmatpush1.msra.mxu0 0.0
        %620 = vmatprep.subr.mxu0 0.0
        %621 = vmatpush1.msra.mxu0 0.0
        %622 = vmatprep.subr.mxu0 0.0
        %623 = vmatpush1.msra.mxu0 0.0
        %624 = vmatprep.subr.mxu0 0.0
        %625 = vmatpush1.msra.mxu0 0.0
        %626 = vmatprep.subr.mxu0 0.0
        %627 = vmatpush1.msra.mxu0 0.0
        %628 = vmatprep.subr.mxu0 0.0
        %629 = vmatpush1.msra.mxu0 0.0
        %630 = vmatprep.subr.mxu0 0.0
        %631 = vmatpush1.msra.mxu0 0.0
        %632 = vmatprep.subr.mxu0 0.0
        %633 = vmatpush1.msra.mxu0 0.0
        %634 = vmatprep.subr.mxu0 0.0
        %635 = vmatpush1.msra.mxu0 0.0
        %636 = vmatprep.subr.mxu0 0.0
        %637 = vmatpush1.msra.mxu0 0.0
        %638 = vmatprep.subr.mxu0 0.0
        %639 = vmatpush1.msra.mxu0 0.0
        %640 = vmatprep.subr.mxu0 0.0
        %641 = vmatpush1.msra.mxu0 0.0
        %642 = vmatprep.subr.mxu0 0.0
        %643 = vmatpush1.msra.mxu0 0.0
        %644 = vmatprep.subr.mxu0 0.0
        %645 = vmatpush1.msra.mxu0 0.0
        %646 = vmatprep.subr.mxu0 0.0
        %647 = vmatpush1.msra.mxu0 0.0
        %648 = vmatprep.subr.mxu0 0.0
        %649 = vmatpush1.msra.mxu0 0.0
        %650 = vmatprep.subr.mxu0 0.0
        %651 = vmatpush1.msra.mxu0 0.0
        %652 = vmatprep.subr.mxu0 0.0
        %653 = vmatpush1.msra.mxu0 0.0
        %654 = vmatprep.subr.mxu0 0.0
        %655 = vmatpush1.msra.mxu0 0.0
        %656 = vmatprep.subr.mxu0 0.0
        %657 = vmatpush1.msra.mxu0 0.0
        %658 = vmatprep.subr.mxu0 0.0
        %659 = vmatpush1.msra.mxu0 0.0
        %660 = vmatprep.mubr.f32.mxu0 0.0
        %661 = vmatmul.mubr.f32.gmra.mrb[0].mxu0 %v495
        %v662 = vpop.f32.mrb[0].mxu0
        %v663 = vadd.f32 0.0, %v662
        %v664 = vpop.f32.mrb[0].mxu0
        %v665 = vadd.f32 0.0, %v664
        %666 = vmatprep.mubr.f32.mxu0 0.0
        %667 = vmatmul.mubr.f32.gmra.mrb[0].mxu0 %v498
        %v668 = vpop.f32.mrb[0].mxu0
        %v669 = vadd.f32 0.0, %v668
        %v670 = vpop.f32.mrb[0].mxu0
        %v671 = vadd.f32 0.0, %v670
        %672 = vmatprep.mubr.f32.mxu0 0.0
        %673 = vmatmul.mubr.f32.gmra.mrb[0].mxu0 %v501
        %v674 = vpop.f32.mrb[0].mxu0
        %v675 = vadd.f32 0.0, %v674
        %v676 = vpop.f32.mrb[0].mxu0
        %v677 = vadd.f32 0.0, %v676
        %678 = vmatprep.mubr.f32.mxu0 0.0
        %679 = vmatmul.mubr.f32.gmra.mrb[0].mxu0 %v504
        %v680 = vpop.f32.mrb[0].mxu0
        %v681 = vadd.f32 0.0, %v680
        %v682 = vpop.f32.mrb[0].mxu0
        %v683 = vadd.f32 0.0, %v682
        %684 = vmatprep.mubr.f32.mxu0 0.0
        %685 = vmatmul.mubr.f32.gmra.mrb[0].mxu0 %v507
        %v686 = vpop.f32.mrb[0].mxu0
        %v687 = vadd.f32 0.0, %v686
        %v688 = vpop.f32.mrb[0].mxu0
        %v689 = vadd.f32 0.0, %v688
        %690 = vmatprep.mubr.f32.mxu0 0.0
        %691 = vmatmul.mubr.f32.gmra.mrb[0].mxu0 %v510
        %v692 = vpop.f32.mrb[0].mxu0
        %v693 = vadd.f32 0.0, %v692
        %v694 = vpop.f32.mrb[0].mxu0
        %v695 = vadd.f32 0.0, %v694
        %696 = vmatprep.mubr.f32.mxu0 0.0
        %697 = vmatmul.mubr.f32.gmra.mrb[0].mxu0 %v513
        %v698 = vpop.f32.mrb[0].mxu0
        %v699 = vadd.f32 0.0, %v698
        %v700 = vpop.f32.mrb[0].mxu0
        %v701 = vadd.f32 0.0, %v700
        %702 = vmatprep.mubr.f32.mxu0 0.0
        %703 = vmatmul.mubr.f32.gmra.mrb[0].mxu0 %v516
        %v704 = vpop.f32.mrb[0].mxu0
        %v705 = vadd.f32 0.0, %v704
        %v706 = vpop.f32.mrb[0].mxu0
        %v707 = vadd.f32 0.0, %v706
        %708 = vmatprep.mubr.f32.mxu0 0.0
        %709 = vmatmul.mubr.f32.gmra.mrb[0].mxu0 %v519
        %v710 = vpop.f32.mrb[0].mxu0
        %v711 = vadd.f32 0.0, %v710
        %v712 = vpop.f32.mrb[0].mxu0
        %v713 = vadd.f32 0.0, %v712
        %714 = vmatprep.mubr.f32.mxu0 0.0
        %715 = vmatmul.mubr.f32.gmra.mrb[0].mxu0 %v522
        %v716 = vpop.f32.mrb[0].mxu0
        %v717 = vadd.f32 0.0, %v716
        %v718 = vpop.f32.mrb[0].mxu0
        %v719 = vadd.f32 0.0, %v718
        %720 = vmatprep.mubr.f32.mxu0 0.0
        %721 = vmatmul.mubr.f32.gmra.mrb[0].mxu0 %v525
        %v722 = vpop.f32.mrb[0].mxu0
        %v723 = vadd.f32 0.0, %v722
        %v724 = vpop.f32.mrb[0].mxu0
        %v725 = vadd.f32 0.0, %v724
        %726 = vmatprep.mubr.f32.mxu0 0.0
        %727 = vmatmul.mubr.f32.gmra.mrb[0].mxu0 %v528
        %v728 = vpop.f32.mrb[0].mxu0
        %v729 = vadd.f32 0.0, %v728
        %v730 = vpop.f32.mrb[0].mxu0
        %v731 = vadd.f32 0.0, %v730
        %732 = vmatprep.mubr.f32.mxu0 0.0
        %733 = vmatmul.mubr.f32.gmra.mrb[0].mxu0 %v531
        %v734 = vpop.f32.mrb[0].mxu0
        %v735 = vadd.f32 0.0, %v734
        %v736 = vpop.f32.mrb[0].mxu0
        %v737 = vadd.f32 0.0, %v736
        %738 = vmatprep.mubr.f32.mxu0 0.0
        %739 = vmatmul.mubr.f32.gmra.mrb[0].mxu0 %v534
        %v740 = vpop.f32.mrb[0].mxu0
        %v741 = vadd.f32 0.0, %v740
        %v742 = vpop.f32.mrb[0].mxu0
        %v743 = vadd.f32 0.0, %v742
        %744 = vmatprep.mubr.f32.mxu0 0.0
        %745 = vmatmul.mubr.f32.gmra.mrb[0].mxu0 %v537
        %v746 = vpop.f32.mrb[0].mxu0
        %v747 = vadd.f32 0.0, %v746
        %v748 = vpop.f32.mrb[0].mxu0
        %v749 = vadd.f32 0.0, %v748
        %750 = vmatprep.mubr.f32.mxu0 0.0
        %751 = vmatmul.mubr.f32.gmra.mrb[0].mxu0 %v540
        %v752 = vpop.f32.mrb[0].mxu0
        %v753 = vadd.f32 0.0, %v752
        %v754 = vpop.f32.mrb[0].mxu0
        %v755 = vadd.f32 0.0, %v754
        %756 = vmatprep.mubr.f32.mxu0 0.0
        %757 = vmatmul.mubr.f32.gmra.mrb[0].mxu0 %v543
        %v758 = vpop.f32.mrb[0].mxu0
        %v759 = vadd.f32 0.0, %v758
        %v760 = vpop.f32.mrb[0].mxu0
        %v761 = vadd.f32 0.0, %v760
        %762 = vmatprep.mubr.f32.mxu0 0.0
        %763 = vmatmul.mubr.f32.gmra.mrb[0].mxu0 %v546
        %v764 = vpop.f32.mrb[0].mxu0
        %v765 = vadd.f32 0.0, %v764
        %v766 = vpop.f32.mrb[0].mxu0
        %v767 = vadd.f32 0.0, %v766
        %768 = vmatprep.mubr.f32.mxu0 0.0
        %769 = vmatmul.mubr.f32.gmra.mrb[0].mxu0 %v549
        %v770 = vpop.f32.mrb[0].mxu0
        %v771 = vadd.f32 0.0, %v770
        %v772 = vpop.f32.mrb[0].mxu0
        %v773 = vadd.f32 0.0, %v772
        %774 = vmatprep.mubr.f32.mxu0 0.0
        %775 = vmatmul.mubr.f32.gmra.mrb[0].mxu0 %v552
        %v776 = vpop.f32.mrb[0].mxu0
        %v777 = vadd.f32 0.0, %v776
        %v778 = vpop.f32.mrb[0].mxu0
        %v779 = vadd.f32 0.0, %v778
        %780 = vmatprep.mubr.f32.mxu0 0.0
        %781 = vmatmul.mubr.f32.gmra.mrb[0].mxu0 %v555
        %v782 = vpop.f32.mrb[0].mxu0
        %v783 = vadd.f32 0.0, %v782
        %v784 = vpop.f32.mrb[0].mxu0
        %v785 = vadd.f32 0.0, %v784
        %786 = vmatprep.mubr.f32.mxu0 0.0
        %787 = vmatmul.mubr.f32.gmra.mrb[0].mxu0 %v558
        %v788 = vpop.f32.mrb[0].mxu0
        %v789 = vadd.f32 0.0, %v788
        %v790 = vpop.f32.mrb[0].mxu0
        %v791 = vadd.f32 0.0, %v790
        %792 = vmatprep.mubr.f32.mxu0 0.0
        %793 = vmatmul.mubr.f32.gmra.mrb[0].mxu0 %v561
        %v794 = vpop.f32.mrb[0].mxu0
        %v795 = vadd.f32 0.0, %v794
        %v796 = vpop.f32.mrb[0].mxu0
        %v797 = vadd.f32 0.0, %v796
        %798 = vmatprep.mubr.f32.mxu0 0.0
        %799 = vmatmul.mubr.f32.gmra.mrb[0].mxu0 %v564
        %v800 = vpop.f32.mrb[0].mxu0
        %v801 = vadd.f32 0.0, %v800
        %v802 = vpop.f32.mrb[0].mxu0
        %v803 = vadd.f32 0.0, %v802
        %804 = vmatprep.mubr.f32.mxu0 0.0
        %805 = vmatmul.mubr.f32.gmra.mrb[0].mxu0 %v567
        %v806 = vpop.f32.mrb[0].mxu0
        %v807 = vadd.f32 0.0, %v806
        %v808 = vpop.f32.mrb[0].mxu0
        %v809 = vadd.f32 0.0, %v808
        %810 = vmatprep.mubr.f32.mxu0 0.0
        %811 = vmatmul.mubr.f32.gmra.mrb[0].mxu0 %v570
        %v812 = vpop.f32.mrb[0].mxu0
        %v813 = vadd.f32 0.0, %v812
        %v814 = vpop.f32.mrb[0].mxu0
        %v815 = vadd.f32 0.0, %v814
        %816 = vmatprep.mubr.f32.mxu0 0.0
        %817 = vmatmul.mubr.f32.gmra.mrb[0].mxu0 %v573
        %v818 = vpop.f32.mrb[0].mxu0
        %v819 = vadd.f32 0.0, %v818
        %v820 = vpop.f32.mrb[0].mxu0
        %v821 = vadd.f32 0.0, %v820
        %822 = vmatprep.mubr.f32.mxu0 0.0
        %823 = vmatmul.mubr.f32.gmra.mrb[0].mxu0 %v576
        %v824 = vpop.f32.mrb[0].mxu0
        %v825 = vadd.f32 0.0, %v824
        %v826 = vpop.f32.mrb[0].mxu0
        %v827 = vadd.f32 0.0, %v826
        %828 = vmatprep.mubr.f32.mxu0 0.0
        %829 = vmatmul.mubr.f32.gmra.mrb[0].mxu0 %v579
        %v830 = vpop.f32.mrb[0].mxu0
        %v831 = vadd.f32 0.0, %v830
        %v832 = vpop.f32.mrb[0].mxu0
        %v833 = vadd.f32 0.0, %v832
        %834 = vmatprep.mubr.f32.mxu0 0.0
        %835 = vmatmul.mubr.f32.gmra.mrb[0].mxu0 %v582
        %v836 = vpop.f32.mrb[0].mxu0
        %v837 = vadd.f32 0.0, %v836
        %v838 = vpop.f32.mrb[0].mxu0
        %v839 = vadd.f32 0.0, %v838
        %840 = vmatprep.mubr.f32.mxu0 0.0
        %841 = vmatmul.mubr.f32.gmra.mrb[0].mxu0 %v585
        %v842 = vpop.f32.mrb[0].mxu0
        %v843 = vadd.f32 0.0, %v842
        %v844 = vpop.f32.mrb[0].mxu0
        %v845 = vadd.f32 0.0, %v844
        %846 = vmatprep.mubr.f32.mxu0 0.0
        %847 = vmatmul.mubr.f32.gmra.mrb[0].mxu0 %v588
        %v848 = vpop.f32.mrb[0].mxu0
        %v849 = vadd.f32 0.0, %v848
        %v850 = vpop.f32.mrb[0].mxu0
        %v851 = vadd.f32 0.0, %v850
        %852 = vdwg.mxu0
        %v853 = vmax.f32 %v663, %v675
        %v854 = vmax.f32 %v669, %v681
        %v855 = vmax.f32 %v853, %v687
        %v856 = vmax.f32 %v854, %v693
        %v857 = vmax.f32 %v855, %v699
        %v858 = vmax.f32 %v856, %v705
        %v859 = vmax.f32 %v857, %v711
        %v860 = vmax.f32 %v858, %v717
        %v861 = vmax.f32 %v859, %v723
        %v862 = vmax.f32 %v860, %v729
        %v863 = vmax.f32 %v861, %v735
        %v864 = vmax.f32 %v862, %v741
        %v865 = vmax.f32 %v863, %v747
        %v866 = vmax.f32 %v864, %v753
        %v867 = vmax.f32 %v865, %v759
        %v868 = vmax.f32 %v866, %v765
        %v869 = vmax.f32 %v867, %v771
        %v870 = vmax.f32 %v868, %v777
        %v871 = vmax.f32 %v869, %v783
        %v872 = vmax.f32 %v870, %v789
        %v873 = vmax.f32 %v871, %v795
        %v874 = vmax.f32 %v872, %v801
        %v875 = vmax.f32 %v873, %v807
        %v876 = vmax.f32 %v874, %v813
        %v877 = vmax.f32 %v875, %v819
        %v878 = vmax.f32 %v876, %v825
        %v879 = vmax.f32 %v877, %v831
        %v880 = vmax.f32 %v878, %v837
        %v881 = vmax.f32 %v879, %v843
        %v882 = vmax.f32 %v880, %v849
        %v883 = vmax.f32 %v881, %v882
        %v884 = vrot.slane %v883, 4
        %v885 = vmax.f32 %v883, %v884
        %v886 = vrot.slane %v885, 2
        %v887 = vmax.f32 %v885, %v886
        %v888 = vrot.slane %v887, 1
        %v889 = vmax.f32 %v887, %v888
        %v890 = vmax.f32 %v665, %v677
        %v891 = vmax.f32 %v671, %v683
        %v892 = vmax.f32 %v890, %v689
        %v893 = vmax.f32 %v891, %v695
        %v894 = vmax.f32 %v892, %v701
        %v895 = vmax.f32 %v893, %v707
        %v896 = vmax.f32 %v894, %v713
        %v897 = vmax.f32 %v895, %v719
        %v898 = vmax.f32 %v896, %v725
        %v899 = vmax.f32 %v897, %v731
        %v900 = vmax.f32 %v898, %v737
        %v901 = vmax.f32 %v899, %v743
        %v902 = vmax.f32 %v900, %v749
        %v903 = vmax.f32 %v901, %v755
        %v904 = vmax.f32 %v902, %v761
        %v905 = vmax.f32 %v903, %v767
        %v906 = vmax.f32 %v904, %v773
        %v907 = vmax.f32 %v905, %v779
        %v908 = vmax.f32 %v906, %v785
        %v909 = vmax.f32 %v907, %v791
        %v910 = vmax.f32 %v908, %v797
        %v911 = vmax.f32 %v909, %v803
        %v912 = vmax.f32 %v910, %v809
        %v913 = vmax.f32 %v911, %v815
        %v914 = vmax.f32 %v912, %v821
        %v915 = vmax.f32 %v913, %v827
        %v916 = vmax.f32 %v914, %v833
        %v917 = vmax.f32 %v915, %v839
        %v918 = vmax.f32 %v916, %v845
        %v919 = vmax.f32 %v917, %v851
        %v920 = vmax.f32 %v918, %v919
        %v921 = vrot.slane %v920, 4
        %v922 = vmax.f32 %v920, %v921
        %v923 = vrot.slane %v922, 2
        %v924 = vmax.f32 %v922, %v923
        %v925 = vrot.slane %v924, 1
        %v926 = vmax.f32 %v924, %v925
        %v927 = vsub.f32 %v663, %v889
        %v928 = vsub.f32 %v665, %v926
        %v929 = vsub.f32 %v669, %v889
        %v930 = vsub.f32 %v671, %v926
        %v931 = vsub.f32 %v675, %v889
        %v932 = vsub.f32 %v677, %v926
        %v933 = vsub.f32 %v681, %v889
        %v934 = vsub.f32 %v683, %v926
        %v935 = vsub.f32 %v687, %v889
        %v936 = vsub.f32 %v689, %v926
        %v937 = vsub.f32 %v693, %v889
        %v938 = vsub.f32 %v695, %v926
        %v939 = vsub.f32 %v699, %v889
        %v940 = vsub.f32 %v701, %v926
        %v941 = vsub.f32 %v705, %v889
        %v942 = vsub.f32 %v707, %v926
        %v943 = vsub.f32 %v711, %v889
        %v944 = vsub.f32 %v713, %v926
        %v945 = vsub.f32 %v717, %v889
        %v946 = vsub.f32 %v719, %v926
        %v947 = vsub.f32 %v723, %v889
        %v948 = vsub.f32 %v725, %v926
        %v949 = vsub.f32 %v729, %v889
        %v950 = vsub.f32 %v731, %v926
        %v951 = vsub.f32 %v735, %v889
        %v952 = vsub.f32 %v737, %v926
        %v953 = vsub.f32 %v741, %v889
        %v954 = vsub.f32 %v743, %v926
        %v955 = vsub.f32 %v747, %v889
        %v956 = vsub.f32 %v749, %v926
        %v957 = vsub.f32 %v753, %v889
        %v958 = vsub.f32 %v755, %v926
        %v959 = vsub.f32 %v759, %v889
        %v960 = vsub.f32 %v761, %v926
        %v961 = vsub.f32 %v765, %v889
        %v962 = vsub.f32 %v767, %v926
        %v963 = vsub.f32 %v771, %v889
        %v964 = vsub.f32 %v773, %v926
        %v965 = vsub.f32 %v777, %v889
        %v966 = vsub.f32 %v779, %v926
        %v967 = vsub.f32 %v783, %v889
        %v968 = vsub.f32 %v785, %v926
        %v969 = vsub.f32 %v789, %v889
        %v970 = vsub.f32 %v791, %v926
        %v971 = vsub.f32 %v795, %v889
        %v972 = vsub.f32 %v797, %v926
        %v973 = vsub.f32 %v801, %v889
        %v974 = vsub.f32 %v803, %v926
        %v975 = vsub.f32 %v807, %v889
        %v976 = vsub.f32 %v809, %v926
        %v977 = vsub.f32 %v813, %v889
        %v978 = vsub.f32 %v815, %v926
        %v979 = vsub.f32 %v819, %v889
        %v980 = vsub.f32 %v821, %v926
        %v981 = vsub.f32 %v825, %v889
        %v982 = vsub.f32 %v827, %v926
        %v983 = vsub.f32 %v831, %v889
        %v984 = vsub.f32 %v833, %v926
        %v985 = vsub.f32 %v837, %v889
        %v986 = vsub.f32 %v839, %v926
        %v987 = vsub.f32 %v843, %v889
        %v988 = vsub.f32 %v845, %v926
        %v989 = vsub.f32 %v849, %v889
        %v990 = vsub.f32 %v851, %v926
        %v991 = vmul.f32 %v927, 1.442695
        %v992 = vpow.pop %v991
        %v993 = vmul.f32 %v928, 1.442695
        %v994 = vpow.pop %v993
        %v995 = vmul.f32 %v929, 1.442695
        %v996 = vpow.pop %v995
        %v997 = vmul.f32 %v930, 1.442695
        %v998 = vpow.pop %v997
        %v999 = vmul.f32 %v931, 1.442695
        %v1000 = vpow.pop %v999
        %v1001 = vmul.f32 %v932, 1.442695
        %v1002 = vpow.pop %v1001
        %v1003 = vmul.f32 %v933, 1.442695
        %v1004 = vpow.pop %v1003
        %v1005 = vmul.f32 %v934, 1.442695
        %v1006 = vpow.pop %v1005
        %v1007 = vmul.f32 %v935, 1.442695
        %v1008 = vpow.pop %v1007
        %v1009 = vmul.f32 %v936, 1.442695
        %v1010 = vpow.pop %v1009
        %v1011 = vmul.f32 %v937, 1.442695
        %v1012 = vpow.pop %v1011
        %v1013 = vmul.f32 %v938, 1.442695
        %v1014 = vpow.pop %v1013
        %v1015 = vmul.f32 %v939, 1.442695
        %v1016 = vpow.pop %v1015
        %v1017 = vmul.f32 %v940, 1.442695
        %v1018 = vpow.pop %v1017
        %v1019 = vmul.f32 %v941, 1.442695
        %v1020 = vpow.pop %v1019
        %v1021 = vmul.f32 %v942, 1.442695
        %v1022 = vpow.pop %v1021
        %v1023 = vmul.f32 %v943, 1.442695
        %v1024 = vpow.pop %v1023
        %v1025 = vmul.f32 %v944, 1.442695
        %v1026 = vpow.pop %v1025
        %v1027 = vmul.f32 %v945, 1.442695
        %v1028 = vpow.pop %v1027
        %v1029 = vmul.f32 %v946, 1.442695
        %v1030 = vpow.pop %v1029
        %v1031 = vmul.f32 %v947, 1.442695
        %v1032 = vpow.pop %v1031
        %v1033 = vmul.f32 %v948, 1.442695
        %v1034 = vpow.pop %v1033
        %v1035 = vmul.f32 %v949, 1.442695
        %v1036 = vpow.pop %v1035
        %v1037 = vmul.f32 %v950, 1.442695
        %v1038 = vpow.pop %v1037
        %v1039 = vmul.f32 %v951, 1.442695
        %v1040 = vpow.pop %v1039
        %v1041 = vmul.f32 %v952, 1.442695
        %v1042 = vpow.pop %v1041
        %v1043 = vmul.f32 %v953, 1.442695
        %v1044 = vpow.pop %v1043
        %v1045 = vmul.f32 %v954, 1.442695
        %v1046 = vpow.pop %v1045
        %v1047 = vmul.f32 %v955, 1.442695
        %v1048 = vpow.pop %v1047
        %v1049 = vmul.f32 %v956, 1.442695
        %v1050 = vpow.pop %v1049
        %v1051 = vmul.f32 %v957, 1.442695
        %v1052 = vpow.pop %v1051
        %v1053 = vmul.f32 %v958, 1.442695
        %v1054 = vpow.pop %v1053
        %v1055 = vmul.f32 %v959, 1.442695
        %v1056 = vpow.pop %v1055
        %v1057 = vmul.f32 %v960, 1.442695
        %v1058 = vpow.pop %v1057
        %v1059 = vmul.f32 %v961, 1.442695
        %v1060 = vpow.pop %v1059
        %v1061 = vmul.f32 %v962, 1.442695
        %v1062 = vpow.pop %v1061
        %v1063 = vmul.f32 %v963, 1.442695
        %v1064 = vpow.pop %v1063
        %v1065 = vmul.f32 %v964, 1.442695
        %v1066 = vpow.pop %v1065
        %v1067 = vmul.f32 %v965, 1.442695
        %v1068 = vpow.pop %v1067
        %v1069 = vmul.f32 %v966, 1.442695
        %v1070 = vpow.pop %v1069
        %v1071 = vmul.f32 %v967, 1.442695
        %v1072 = vpow.pop %v1071
        %v1073 = vmul.f32 %v968, 1.442695
        %v1074 = vpow.pop %v1073
        %v1075 = vmul.f32 %v969, 1.442695
        %v1076 = vpow.pop %v1075
        %v1077 = vmul.f32 %v970, 1.442695
        %v1078 = vpow.pop %v1077
        %v1079 = vmul.f32 %v971, 1.442695
        %v1080 = vpow.pop %v1079
        %v1081 = vmul.f32 %v972, 1.442695
        %v1082 = vpow.pop %v1081
        %v1083 = vmul.f32 %v973, 1.442695
        %v1084 = vpow.pop %v1083
        %v1085 = vmul.f32 %v974, 1.442695
        %v1086 = vpow.pop %v1085
        %v1087 = vmul.f32 %v975, 1.442695
        %v1088 = vpow.pop %v1087
        %v1089 = vmul.f32 %v976, 1.442695
        %v1090 = vpow.pop %v1089
        %v1091 = vmul.f32 %v977, 1.442695
        %v1092 = vpow.pop %v1091
        %v1093 = vmul.f32 %v978, 1.442695
        %v1094 = vpow.pop %v1093
        %v1095 = vmul.f32 %v979, 1.442695
        %v1096 = vpow.pop %v1095
        %v1097 = vmul.f32 %v980, 1.442695
        %v1098 = vpow.pop %v1097
        %v1099 = vmul.f32 %v981, 1.442695
        %v1100 = vpow.pop %v1099
        %v1101 = vmul.f32 %v982, 1.442695
        %v1102 = vpow.pop %v1101
        %v1103 = vmul.f32 %v983, 1.442695
        %v1104 = vpow.pop %v1103
        %v1105 = vmul.f32 %v984, 1.442695
        %v1106 = vpow.pop %v1105
        %v1107 = vmul.f32 %v985, 1.442695
        %v1108 = vpow.pop %v1107
        %v1109 = vmul.f32 %v986, 1.442695
        %v1110 = vpow.pop %v1109
        %v1111 = vmul.f32 %v987, 1.442695
        %v1112 = vpow.pop %v1111
        %v1113 = vmul.f32 %v988, 1.442695
        %v1114 = vpow.pop %v1113
        %v1115 = vmul.f32 %v989, 1.442695
        %v1116 = vpow.pop %v1115
        %v1117 = vmul.f32 %v990, 1.442695
        %v1118 = vpow.pop %v1117
        %1119 = vmatprep.subr.mxu0 %v994
        %1120 = vmatpush1.msra.mxu0 %v992
        %1121 = vmatprep.subr.mxu0 %v998
        %1122 = vmatpush1.msra.mxu0 %v996
        %1123 = vmatprep.subr.mxu0 %v1002
        %1124 = vmatpush1.msra.mxu0 %v1000
        %1125 = vmatprep.subr.mxu0 %v1006
        %1126 = vmatpush1.msra.mxu0 %v1004
        %1127 = vmatprep.subr.mxu0 %v1010
        %1128 = vmatpush1.msra.mxu0 %v1008
        %1129 = vmatprep.subr.mxu0 %v1014
        %1130 = vmatpush1.msra.mxu0 %v1012
        %1131 = vmatprep.subr.mxu0 %v1018
        %1132 = vmatpush1.msra.mxu0 %v1016
        %1133 = vmatprep.subr.mxu0 %v1022
        %1134 = vmatpush1.msra.mxu0 %v1020
        %1135 = vmatprep.subr.mxu0 %v1026
        %1136 = vmatpush1.msra.mxu0 %v1024
        %1137 = vmatprep.subr.mxu0 %v1030
        %1138 = vmatpush1.msra.mxu0 %v1028
        %1139 = vmatprep.subr.mxu0 %v1034
        %1140 = vmatpush1.msra.mxu0 %v1032
        %1141 = vmatprep.subr.mxu0 %v1038
        %1142 = vmatpush1.msra.mxu0 %v1036
        %1143 = vmatprep.subr.mxu0 %v1042
        %1144 = vmatpush1.msra.mxu0 %v1040
        %1145 = vmatprep.subr.mxu0 %v1046
        %1146 = vmatpush1.msra.mxu0 %v1044
        %1147 = vmatprep.subr.mxu0 %v1050
        %1148 = vmatpush1.msra.mxu0 %v1048
        %1149 = vmatprep.subr.mxu0 %v1054
        %1150 = vmatpush1.msra.mxu0 %v1052
        %1151 = vmatprep.subr.mxu0 %v1058
        %1152 = vmatpush1.msra.mxu0 %v1056
        %1153 = vmatprep.subr.mxu0 %v1062
        %1154 = vmatpush1.msra.mxu0 %v1060
        %1155 = vmatprep.subr.mxu0 %v1066
        %1156 = vmatpush1.msra.mxu0 %v1064
        %1157 = vmatprep.subr.mxu0 %v1070
        %1158 = vmatpush1.msra.mxu0 %v1068
        %1159 = vmatprep.subr.mxu0 %v1074
        %1160 = vmatpush1.msra.mxu0 %v1072
        %1161 = vmatprep.subr.mxu0 %v1078
        %1162 = vmatpush1.msra.mxu0 %v1076
        %1163 = vmatprep.subr.mxu0 %v1082
        %1164 = vmatpush1.msra.mxu0 %v1080
        %1165 = vmatprep.subr.mxu0 %v1086
        %1166 = vmatpush1.msra.mxu0 %v1084
        %1167 = vmatprep.subr.mxu0 %v1090
        %1168 = vmatpush1.msra.mxu0 %v1088
        %1169 = vmatprep.subr.mxu0 %v1094
        %1170 = vmatpush1.msra.mxu0 %v1092
        %1171 = vmatprep.subr.mxu0 %v1098
        %1172 = vmatpush1.msra.mxu0 %v1096
        %1173 = vmatprep.subr.mxu0 %v1102
        %1174 = vmatpush1.msra.mxu0 %v1100
        %1175 = vmatprep.subr.mxu0 %v1106
        %1176 = vmatpush1.msra.mxu0 %v1104
        %1177 = vmatprep.subr.mxu0 %v1110
        %1178 = vmatpush1.msra.mxu0 %v1108
        %1179 = vmatprep.subr.mxu0 %v1114
        %1180 = vmatpush1.msra.mxu0 %v1112
        %1181 = vmatprep.subr.mxu0 %v1118
        %1182 = vmatpush1.msra.mxu0 %v1116
        %1183 = vmatprep.mubr.f32.mxu0 %v426
        %1184 = vmatmul.mubr.f32.gmra.mrb[0].mxu0 %v425
        %v1185 = vpop.f32.mrb[0].mxu0
        %v1186 = vadd.f32 0.0, %v1185
        %v1187 = vpop.f32.mrb[0].mxu0
        %v1188 = vadd.f32 0.0, %v1187
        %1189 = vdwg.mxu0
        %v1190 = vlaneseq
        %v1191 = vshrl.u32 %v1190, 7
        %v1192 = vsub.s32 4, %v1191
        %v1193 = vrot.slane %v1186, %v1192
        %v1194 = vlaneseq
        %v1195 = vshrl.u32 %v1194, 7
        %v1196 = vsub.s32 4, %v1195
        %v1197 = vrot.slane %v1188, %v1196
        %v1198 = vrcp.pop %v1193
        %v1199 = vmul.f32 %v1186, %v1198
        %v1200 = vrcp.pop %v1197
        %v1201 = vmul.f32 %v1188, %v1200
        %v1202 = vld [vmem:[%s3] sm:$0xf]
        %v1204 = vsel %vm344, %v1202, 0
        %v1207 = vsel %vm348, %v1199, 0
        %v1210 = vsel %vm348, %v1201, 0
        %1212 = vmatprep.subr.mxu0 %v1210
        %1213 = vmatpush1.msra.mxu0 %v1207
        %1214 = vmatprep.subr.mxu0 0.0
        %1215 = vmatpush1.msra.mxu0 0.0
        %1216 = vmatprep.subr.mxu0 0.0
        %1217 = vmatpush1.msra.mxu0 0.0
        %1218 = vmatprep.subr.mxu0 0.0
        %1219 = vmatpush1.msra.mxu0 0.0
        %1220 = vmatprep.subr.mxu0 0.0
        %1221 = vmatpush1.msra.mxu0 0.0
        %1222 = vmatprep.subr.mxu0 0.0
        %1223 = vmatpush1.msra.mxu0 0.0
        %1224 = vmatprep.subr.mxu0 0.0
        %1225 = vmatpush1.msra.mxu0 0.0
        %1226 = vmatprep.subr.mxu0 0.0
        %1227 = vmatpush1.msra.mxu0 0.0
        %1228 = vmatprep.subr.mxu0 0.0
        %1229 = vmatpush1.msra.mxu0 0.0
        %1230 = vmatprep.subr.mxu0 0.0
        %1231 = vmatpush1.msra.mxu0 0.0
        %1232 = vmatprep.subr.mxu0 0.0
        %1233 = vmatpush1.msra.mxu0 0.0
        %1234 = vmatprep.subr.mxu0 0.0
        %1235 = vmatpush1.msra.mxu0 0.0
        %1236 = vmatprep.subr.mxu0 0.0
        %1237 = vmatpush1.msra.mxu0 0.0
        %1238 = vmatprep.subr.mxu0 0.0
        %1239 = vmatpush1.msra.mxu0 0.0
        %1240 = vmatprep.subr.mxu0 0.0
        %1241 = vmatpush1.msra.mxu0 0.0
        %1242 = vmatprep.subr.mxu0 0.0
        %1243 = vmatpush1.msra.mxu0 0.0
        %1244 = vmatprep.subr.mxu0 0.0
        %1245 = vmatpush1.msra.mxu0 0.0
        %1246 = vmatprep.subr.mxu0 0.0
        %1247 = vmatpush1.msra.mxu0 0.0
        %1248 = vmatprep.subr.mxu0 0.0
        %1249 = vmatpush1.msra.mxu0 0.0
        %1250 = vmatprep.subr.mxu0 0.0
        %1251 = vmatpush1.msra.mxu0 0.0
        %1252 = vmatprep.subr.mxu0 0.0
        %1253 = vmatpush1.msra.mxu0 0.0
        %1254 = vmatprep.subr.mxu0 0.0
        %1255 = vmatpush1.msra.mxu0 0.0
        %1256 = vmatprep.subr.mxu0 0.0
        %1257 = vmatpush1.msra.mxu0 0.0
        %1258 = vmatprep.subr.mxu0 0.0
        %1259 = vmatpush1.msra.mxu0 0.0
        %1260 = vmatprep.subr.mxu0 0.0
        %1261 = vmatpush1.msra.mxu0 0.0
        %1262 = vmatprep.subr.mxu0 0.0
        %1263 = vmatpush1.msra.mxu0 0.0
        %1264 = vmatprep.subr.mxu0 0.0
        %1265 = vmatpush1.msra.mxu0 0.0
        %1266 = vmatprep.subr.mxu0 0.0
        %1267 = vmatpush1.msra.mxu0 0.0
        %1268 = vmatprep.subr.mxu0 0.0
        %1269 = vmatpush1.msra.mxu0 0.0
        %1270 = vmatprep.subr.mxu0 0.0
        %1271 = vmatpush1.msra.mxu0 0.0
        %1272 = vmatprep.subr.mxu0 0.0
        %1273 = vmatpush1.msra.mxu0 0.0
        %1274 = vmatprep.subr.mxu0 0.0
        %1275 = vmatpush1.msra.mxu0 0.0
        %1276 = vmatprep.mubr.f32.mxu0 0.0
        %1277 = vmatmul.mubr.f32.gmra.mrb[0].mxu0 %v1204
        %v1278 = vpop.f32.mrb[0].mxu0
        %v1279 = vadd.f32 0.0, %v1278
        %v1280 = vpop.f32.mrb[0].mxu0
        %v1281 = vadd.f32 0.0, %v1280
        %1282 = vdwg.mxu0
        %v1285 = vcombine.low %v1279, %v1281
        %1287 = vst [vmem:[%s227] sm:$0xff] %v1285
        %s1288 = sand.u32 %s132, 1
        %s1289 = scalar_lea.sflag [#allocation6], %s1288
        %s1290 = sand.u32 %s132, 1
        %s1291 = smul.addr %s1290, 8
        %s1292 = scalar_lea.vmem [#allocation7], %s1291
        // Predicated region
        $region45: #{tpu_custom_call.1} parent=35 // pred_check
          %p1293 = pneg %p142
        $region46: #{tpu_custom_call.1} parent=35 // pred_check_branch
          %1295 = sbr.rel (%p1293) target = $region48
        $region47: #{tpu_custom_call.1} parent=35 // pred_region
          %s1296 = smul.u32 2, %s26
          %s1298 = ssub.s32 128, 128
          %1299 = vsyncadd %s1289, %s1298
          %s1300 = smul.addr %s25, 2
          %s1301 = sadd.s32 %s1296, %s1300
          %s1302 = smul.addr %s1301, 64
          %s1303 = scalar_lea.hbm %s4, %s1302
          %s1305 = sshll.u32 %s1292, 4
          %s1306 = int_to_ptr.vmem [resolvable:$true] %s1305
          %1308 = dma.vmem_to_hbm [thread:$0]  %s1306, 128, %s1303, %s1289
        $region48: #{tpu_custom_call.1} parent=35 // pred_fallthru
          _
      $region36: #{tpu_custom_call.1} parent=5 // pred_fallthru
        _
      %p1309 = scmp.le.s32.totalorder 2, %s16
      // Predicated region
      $region49: #{tpu_custom_call.1} parent=5 // pred_check
        %p1310 = pneg %p1309
      $region50: #{tpu_custom_call.1} parent=5 // pred_check_branch
        %1312 = sbr.rel (%p1310) target = $region52
      $region51: #{tpu_custom_call.1} parent=5 // pred_region
        %s1313 = ssub.s32 %s16, 2
        // Predicated region
        $region53: #{tpu_custom_call.1} parent=51 // pred_check
          %p1314 = pneg %p148
        $region54: #{tpu_custom_call.1} parent=51 // pred_check_branch
          %1316 = sbr.rel (%p1314) target = $region56
        $region55: #{tpu_custom_call.1} parent=51 // pred_region
          %s1317 = sand.u32 %s133, 1
          %s1318 = scalar_lea.sflag [#allocation6], %s1317
          %s1319 = sand.u32 %s133, 1
          %s1320 = smul.addr %s1319, 8
          %s1321 = scalar_lea.vmem [#allocation7], %s1320
          %1322 = dma.done %s1318, 128
        $region56: #{tpu_custom_call.1} parent=51 // pred_fallthru
          _
      $region52: #{tpu_custom_call.1} parent=5 // pred_fallthru
        _
    $region6: #{tpu_custom_call.1} parent=1 // loop_footer
      %s20 = sadd.s32 1, %s16
    $region7: #{tpu_custom_call.1} parent=1 // loop_footer_branch
      %15 = sbr.rel target = $region3
    $region8: #{tpu_custom_call.1} parent=1 // loop_exit
      _
    %1323 = vsyncpa [#allocation5], 1
    %s1324 = scalar_lea.sflag [#allocation5], 1
    %1325 = vsyncpa %s1324, 1
    %1326 = vsyncpa [#allocation6], 1
    %s1327 = scalar_lea.sflag [#allocation6], 1
    %1328 = vsyncpa %s1327, 1

</llo_original>
